<compile_context>
chip_gen: v7x
topology: tpu7x:2x2x1
jax: 0.10.0
libtpu: 0.0.40
codegen_flags: <defaults>
</compile_context>

<pallas_src>
import functools

import jax
import jax.numpy as jnp
from jax.experimental import pallas as pl
from jax.experimental.pallas import tpu as pltpu


_LANE = 512                         # lane extent of every tile (multiple of 128)
_MAX_TILE_BYTES = 8 * 1024 * 1024   # per-input tile target (double-buffered)
_SMALL_TOTAL = 16 * _LANE           # below this, plain XLA beats a kernel launch


def _cdiv(a, b):
    return (a + b - 1) // b


def _round_up(x, m):
    return _cdiv(x, m) * m


def _detect_num_shards():
    """One leading 'parallel' shard per TensorCore (2 on v7x, 1 on v5e/v6e)."""
    try:
        kind = jax.devices()[0].device_kind.lower()
    except Exception:
        return 2
    if any(tag in kind for tag in ("lite", "v5e", "v6e")):
        return 1          # single-TensorCore inference parts
    return 2              # v7x (2 TCs) and megacore parts; harmless elsewhere


def _fold_rows(x, tile_rows):
    """Fold a (tile_rows, LANE) f32 value down to (8, LANE) with a balanced
    tree of sublane-aligned vector adds (pure VPU; static 8-row slices)."""
    parts = [x[r:r + 8, :] for r in range(0, tile_rows, 8)]
    while len(parts) > 1:
        nxt = [parts[i] + parts[i + 1] for i in range(0, len(parts) - 1, 2)]
        if len(parts) & 1:
            nxt.append(parts[-1])
        parts = nxt
    return parts[0]


def _rmsvd_kernel(pred_ref, tgt_ref, res_ref, *, tile_rows, valid_rows,
                  needs_mask):
    s = pl.program_id(1)  # reduction (chunk) axis — last in the grid

    # Zero the resident (8, LANE) output/accumulator block at the start of
    # each shard's reduction sweep.
    @pl.when(s == 0)
    def _():
        res_ref[...] = jnp.zeros_like(res_ref)

    # Pure VPU work per step: upcast, diff, square, fold to (8, LANE), add.
    d = pred_ref[...].astype(jnp.float32) - tgt_ref[...].astype(jnp.float32)
    dd = d * d

    if needs_mask:
        blk = pl.program_id(0) * pl.num_programs(1) + s
        row0 = blk * tile_rows

        @pl.when(row0 + tile_rows > valid_rows)        # ragged / OOB block
        def _():
            ridx = row0 + jax.lax.broadcasted_iota(
                jnp.int32, (tile_rows, _LANE), 0)
            masked = jnp.where(ridx < valid_rows, dd, 0.0)
            res_ref[...] += _fold_rows(masked, tile_rows)

        @pl.when(row0 + tile_rows <= valid_rows)       # fully in-bounds block
        def _():
            res_ref[...] += _fold_rows(dd, tile_rows)
    else:
        res_ref[...] += _fold_rows(dd, tile_rows)


def rmsvd_loss(output, target, *, num_shards=None, max_tile_bytes=None):
    """output, target: (N, 2, H, W) arrays.  Returns scalar f32 RMSVD."""
    N, C, H, W = output.shape
    assert C == 2, "RMSVDLoss expects 2 channels (u, v)"
    assert target.shape == output.shape

    total = N * C * H * W
    inv_n = 1.0 / float(N * H * W)   # shared denominator of both channel means

    # Tiny inputs: launch + pipeline prologue dominate; just use XLA.
    if total <= _SMALL_TOTAL:
        d = output.astype(jnp.float32) - target.astype(jnp.float32)
        return jnp.sqrt(jnp.sum(d * d) * inv_n)

    # ---- lane-dense 2-D view (zero-copy when total is a multiple of 512) ----
    pad = (-total) % _LANE
    rows = (total + pad) // _LANE

    def _as_rows(x):
        if pad:
            # <512 zeros; identical pads on both inputs => zero diff, exact sum.
            return jnp.pad(x.reshape(-1), (0, pad)).reshape(rows, _LANE)
        return x.reshape(rows, _LANE)

    pred2 = _as_rows(output)
    tgt2 = _as_rows(target)

    # ---- tile / shard geometry: split real rows across shards ----
    if num_shards is None:
        num_shards = _detect_num_shards()
    if max_tile_bytes is None:
        max_tile_bytes = _MAX_TILE_BYTES
    itemsize = jnp.dtype(output.dtype).itemsize
    max_tile_rows = max(16, (max_tile_bytes // (_LANE * itemsize)) // 16 * 16)

    rows_per_shard = _cdiv(rows, num_shards)
    steps = _cdiv(rows_per_shard, max_tile_rows)
    tile_rows = _round_up(_cdiv(rows_per_shard, steps), 16)   # <= max_tile_rows
    needs_mask = num_shards * steps * tile_rows > rows        # static
    last_blk = _cdiv(rows, tile_rows) - 1   # clamp: never a fully-OOB DMA

    def idx_map(c, s):
        return (jnp.minimum(c * steps + s, last_blk), 0)

    kernel = functools.partial(_rmsvd_kernel, tile_rows=tile_rows,
                               valid_rows=rows, needs_mask=needs_mask)

    partials = pl.pallas_call(
        kernel,
        out_shape=jax.ShapeDtypeStruct((num_shards * 8, _LANE), jnp.float32),
        grid_spec=pltpu.PrefetchScalarGridSpec(
            num_scalar_prefetch=0,
            grid=(num_shards, steps),
            in_specs=[
                pl.BlockSpec((tile_rows, _LANE), idx_map),
                pl.BlockSpec((tile_rows, _LANE), idx_map),
            ],
            # Same output block across the reduction axis => resident accumulator.
            out_specs=pl.BlockSpec((8, _LANE), lambda c, s: (c, 0)),
        ),
        compiler_params=pltpu.CompilerParams(
            # Shard across TensorCores (v7x); reduction axis is "arbitrary".
            dimension_semantics=("parallel", "arbitrary"),
            # 2 inputs x 2 buffers x <=8 MiB tiles ~= 32 MiB live; fits v7x's
            # 64 MiB physical VMEM as well as v5e/v6e's 128 MiB.
            vmem_limit_bytes=48 * 1024 * 1024,
        ),
    )(pred2, tgt2)

    # Tiny wrapper-side finish: combine shard partials, mean, sqrt.
    return jnp.sqrt(jnp.sum(partials) * inv_n)


def _rmsvd_ref(output, target):
    o = output.astype(jnp.float32)
    t = target.astype(jnp.float32)
    u_err = (o[:, 0] - t[:, 0]) ** 2
    v_err = (o[:, 1] - t[:, 1]) ** 2
    return jnp.sqrt(u_err.mean() + v_err.mean())


if __name__ == "__main__":
    key = jax.random.PRNGKey(0)

    cases = [
        # (shape, dtype, kwargs)
        ((2, 2, 16, 16), jnp.float32, {}),                       # fast path
        ((2, 2, 80, 80), jnp.float32, {}),                       # kernel + ragged-row mask
        ((2, 2, 80, 80), jnp.float32,
         dict(max_tile_bytes=32 * 1024, num_shards=2)),          # multi-step + 2 shards
        ((2, 2, 63, 65), jnp.float32, {}),                       # lane-pad (<512) path
        ((2, 2, 80, 80), jnp.bfloat16, {}),                      # bf16 in, f32 accumulate
    ]

    for i, (shape, dtype, kwargs) in enumerate(cases):
        k1, k2 = jax.random.split(jax.random.fold_in(key, i))
        out = jax.random.normal(k1, shape, dtype=jnp.float32).astype(dtype)
        tgt = jax.random.normal(k2, shape, dtype=jnp.float32).astype(dtype)

        got = jax.block_until_ready(rmsvd_loss(out, tgt, **kwargs))
        want = jax.block_until_ready(_rmsvd_ref(out, tgt))
        assert jnp.allclose(got, want, rtol=1e-5, atol=1e-6), (
            shape, dtype, kwargs, got, want)

    print("KERNEL_OK")
</pallas_src>

<mosaic_0001>
module attributes {stable_mosaic.version = 11 : i64} {
  func.func @_rmsvd_kernel(%arg0: i32, %arg1: i32, %arg2: memref<32x512xf32, #tpu.memory_space<vmem>>, %arg3: memref<32x512xf32, #tpu.memory_space<vmem>>, %arg4: memref<8x512xf32, #tpu.memory_space<vmem>>) attributes {dimension_semantics = [#tpu.dimension_semantics<parallel>, #tpu.dimension_semantics<arbitrary>], iteration_bounds = array<i64: 2, 1>, scalar_prefetch = 0 : i64, scratch_operands = 0 : i64, tpu.core_type = #tpu.core_type<tc>, window_params = [{transform_indices = @transform_0, window_bounds = array<i64: 32, 512>}, {transform_indices = @transform_1, window_bounds = array<i64: 32, 512>}, {transform_indices = @transform_2, window_bounds = array<i64: 8, 512>}]} {
    %c0_i32 = arith.constant 0 : i32
    %0 = arith.cmpi eq, %arg1, %c0_i32 : i32
    %1 = arith.extui %0 : i1 to i32
    %c0_i32_0 = arith.constant 0 : i32
    %2 = arith.cmpi ne, %1, %c0_i32_0 : i32
    scf.if %2 {
      %cst = arith.constant 0.000000e+00 : f32
      %18 = vector.broadcast %cst : f32 to vector<8x512xf32>
      %c0_9 = arith.constant 0 : index
      %c0_10 = arith.constant 0 : index
      %19 = vector.load %arg4[%c0_9, %c0_10] : memref<8x512xf32, #tpu.memory_space<vmem>>, vector<8x512xf32>
      tpu.vector_store %arg4[%c0_9, %c0_10], %18 {strides = array<i32>} : memref<8x512xf32, #tpu.memory_space<vmem>>, vector<8x512xf32>,
    } else {
    }
    %c0 = arith.constant 0 : index
    %c0_1 = arith.constant 0 : index
    %3 = vector.load %arg2[%c0, %c0_1] : memref<32x512xf32, #tpu.memory_space<vmem>>, vector<32x512xf32>
    %c0_2 = arith.constant 0 : index
    %c0_3 = arith.constant 0 : index
    %4 = vector.load %arg3[%c0_2, %c0_3] : memref<32x512xf32, #tpu.memory_space<vmem>>, vector<32x512xf32>
    %5 = arith.subf %3, %4 : vector<32x512xf32>
    %6 = arith.mulf %5, %5 : vector<32x512xf32>
    %c1_i32 = arith.constant 1 : i32
    %7 = arith.muli %arg0, %c1_i32 : i32
    %8 = arith.addi %7, %arg1 : i32
    %c32_i32 = arith.constant 32 : i32
    %9 = arith.muli %8, %c32_i32 : i32
    %c32_i32_4 = arith.constant 32 : i32
    %10 = arith.addi %9, %c32_i32_4 : i32
    %c50_i32 = arith.constant 50 : i32
    %11 = arith.cmpi sgt, %10, %c50_i32 : i32
    %12 = arith.extui %11 : i1 to i32
    %c0_i32_5 = arith.constant 0 : i32
    %13 = arith.cmpi ne, %12, %c0_i32_5 : i32
    scf.if %13 {
      %18 = tpu.iota {dimensions = array<i32: 0>} : vector<32x512xi32>
      %19 = vector.broadcast %9 : i32 to vector<32x512xi32>
      %20 = arith.addi %19, %18 : vector<32x512xi32>
      %c50_i32_9 = arith.constant 50 : i32
      %21 = vector.broadcast %c50_i32_9 : i32 to vector<32x512xi32>
      %22 = arith.cmpi slt, %20, %21 : vector<32x512xi32>
      %cst = arith.constant 0.000000e+00 : f32
      %23 = vector.broadcast %cst : f32 to vector<32x512xf32>
      %24 = arith.select %22, %6, %23 : vector<32x512xi1>, vector<32x512xf32>
      %c0_10 = arith.constant 0 : index
      %c0_11 = arith.constant 0 : index
      %25 = vector.load %arg4[%c0_10, %c0_11] : memref<8x512xf32, #tpu.memory_space<vmem>>, vector<8x512xf32>
      %26 = vector.extract_strided_slice %24 {offsets = [0, 0], sizes = [8, 512], strides = [1, 1]} : vector<32x512xf32> to vector<8x512xf32>
      %27 = vector.extract_strided_slice %24 {offsets = [8, 0], sizes = [8, 512], strides = [1, 1]} : vector<32x512xf32> to vector<8x512xf32>
      %28 = vector.extract_strided_slice %24 {offsets = [16, 0], sizes = [8, 512], strides = [1, 1]} : vector<32x512xf32> to vector<8x512xf32>
      %29 = vector.extract_strided_slice %24 {offsets = [24, 0], sizes = [8, 512], strides = [1, 1]} : vector<32x512xf32> to vector<8x512xf32>
      %30 = arith.addf %26, %27 : vector<8x512xf32>
      %31 = arith.addf %28, %29 : vector<8x512xf32>
      %32 = arith.addf %30, %31 : vector<8x512xf32>
      %33 = arith.addf %25, %32 : vector<8x512xf32>
      %c0_12 = arith.constant 0 : index
      %c0_13 = arith.constant 0 : index
      %34 = vector.load %arg4[%c0_12, %c0_13] : memref<8x512xf32, #tpu.memory_space<vmem>>, vector<8x512xf32>
      tpu.vector_store %arg4[%c0_12, %c0_13], %33 {strides = array<i32>} : memref<8x512xf32, #tpu.memory_space<vmem>>, vector<8x512xf32>,
    } else {
    }
    %c32_i32_6 = arith.constant 32 : i32
    %14 = arith.addi %9, %c32_i32_6 : i32
    %c50_i32_7 = arith.constant 50 : i32
    %15 = arith.cmpi sle, %14, %c50_i32_7 : i32
    %16 = arith.extui %15 : i1 to i32
    %c0_i32_8 = arith.constant 0 : i32
    %17 = arith.cmpi ne, %16, %c0_i32_8 : i32
    scf.if %17 {
      %c0_9 = arith.constant 0 : index
      %c0_10 = arith.constant 0 : index
      %18 = vector.load %arg4[%c0_9, %c0_10] : memref<8x512xf32, #tpu.memory_space<vmem>>, vector<8x512xf32>
      %19 = vector.extract_strided_slice %6 {offsets = [0, 0], sizes = [8, 512], strides = [1, 1]} : vector<32x512xf32> to vector<8x512xf32>
      %20 = vector.extract_strided_slice %6 {offsets = [8, 0], sizes = [8, 512], strides = [1, 1]} : vector<32x512xf32> to vector<8x512xf32>
      %21 = vector.extract_strided_slice %6 {offsets = [16, 0], sizes = [8, 512], strides = [1, 1]} : vector<32x512xf32> to vector<8x512xf32>
      %22 = vector.extract_strided_slice %6 {offsets = [24, 0], sizes = [8, 512], strides = [1, 1]} : vector<32x512xf32> to vector<8x512xf32>
      %23 = arith.addf %19, %20 : vector<8x512xf32>
      %24 = arith.addf %21, %22 : vector<8x512xf32>
      %25 = arith.addf %23, %24 : vector<8x512xf32>
      %26 = arith.addf %18, %25 : vector<8x512xf32>
      %c0_11 = arith.constant 0 : index
      %c0_12 = arith.constant 0 : index
      %27 = vector.load %arg4[%c0_11, %c0_12] : memref<8x512xf32, #tpu.memory_space<vmem>>, vector<8x512xf32>
      tpu.vector_store %arg4[%c0_11, %c0_12], %26 {strides = array<i32>} : memref<8x512xf32, #tpu.memory_space<vmem>>, vector<8x512xf32>,
    } else {
    }
    return
  }
  func.func @transform_0(%arg0: i32, %arg1: i32) -> (i32, i32) {
    %c1_i32 = arith.constant 1 : i32
    %0 = arith.muli %arg0, %c1_i32 : i32
    %1 = arith.addi %0, %arg1 : i32
    %c1_i32_0 = arith.constant 1 : i32
    %2 = arith.minsi %1, %c1_i32_0 : i32
    %c0_i32 = arith.constant 0 : i32
    %c0_i32_1 = arith.constant 0 : i32
    return %2, %c0_i32 : i32, i32
  }
  func.func @transform_1(%arg0: i32, %arg1: i32) -> (i32, i32) {
    %c1_i32 = arith.constant 1 : i32
    %0 = arith.muli %arg0, %c1_i32 : i32
    %1 = arith.addi %0, %arg1 : i32
    %c1_i32_0 = arith.constant 1 : i32
    %2 = arith.minsi %1, %c1_i32_0 : i32
    %c0_i32 = arith.constant 0 : i32
    %c0_i32_1 = arith.constant 0 : i32
    return %2, %c0_i32 : i32, i32
  }
  func.func @transform_2(%arg0: i32, %arg1: i32) -> (i32, i32) {
    %c0_i32 = arith.constant 0 : i32
    %c0_i32_0 = arith.constant 0 : i32
    return %arg0, %c0_i32 : i32, i32
  }
}

</mosaic_0001>

<llo_original>
// kernel: tpu_custom_call.1
$region0: #{tpu_custom_call.1}
  #allocation0 [shape = 'u32[]', space=smem, size = 0x4, offset = 0x4, fixed_abs, tag = 'smem constant byte address 0x4 - core index']
  #allocation1 [shape = 'u32[144,128]{1,0:T(1,128)}', space=vmem, size = 0x12000, scoped, tag = 'internal scratch']
  %s0 = inlined_call_operand.hbm [shape: f32[50,512], index: 0, kind: input, shape index: {}]
  %s1 = inlined_call_operand.hbm [shape: f32[50,512], index: 1, kind: input, shape index: {}]
  %s2 = inlined_call_operand.hbm [shape: f32[16,512], index: 2, kind: output, shape index: {}]
  %s3 = sld [smem:[#allocation0]]
  $region61: #{tpu_custom_call.1} parent=0
    _
  %s5 = ssub.s32 1, %s3
  %s6 = scalar_select 0, %s5, %s3
  $region1: #{tpu_custom_call.1} parent=0
    #allocation2 [shape = 'u8[131072]{0}', space=vmem, size = 0x20000, scoped, tag = 'input window, operand 0']
    #allocation3 [shape = 's32[2]{0}', space=sflag, size = 0x8, scoped, tag = 'scoped memory for tpu_custom_call.1']
    #allocation4 [shape = 's32[2]{0}', space=sflag, size = 0x8, scoped, tag = 'scoped memory for tpu_custom_call.1']
    #allocation5 [shape = 'u8[131072]{0}', space=vmem, size = 0x20000, scoped, tag = 'input window, operand 1']
    #allocation6 [shape = 's32[2]{0}', space=sflag, size = 0x8, scoped, tag = 'scoped memory for tpu_custom_call.1']
    #allocation7 [shape = 'u8[32768]{0}', space=vmem, size = 0x8000, scoped, tag = 'output window, operand 0']
    %7 = vsyncpa [#allocation3], 0
    %s8 = scalar_lea.sflag [#allocation3], 1
    %9 = vsyncpa %s8, 0
    %10 = vsyncpa [#allocation6], 0
    %s11 = scalar_lea.sflag [#allocation6], 1
    %12 = vsyncpa %s11, 0
    %13 = vsyncpa [#allocation4], 0
    %s14 = scalar_lea.sflag [#allocation4], 1
    %15 = vsyncpa %s14, 0
    loop: start=0, step=1, limit=4
    $region2: #{tpu_custom_call.1} parent=1 // loop_pre_header
      _
    $region3: #{tpu_custom_call.1} parent=1 // loop_header
      %s17 = sphi 0, %s21
      %p18 = scmp.ge.s32.totalorder %s17, 4
      %s24 = sphi 0, %s36
      %s25 = sphi 0, %s32
      %s26 = sphi 0, %s24
      %s27 = sphi 0, %s25
      %s28 = sphi 0, %s26
      %s29 = sphi 0, %s27
      %s45 = sphi 0, %s47
      %s48 = sphi 0, %s45
      %s49 = sphi 0, %s48
      %s65 = sphi 0, %s49
      %s77 = sphi 0, %s79
      %s80 = sphi 0, %s77
      %s81 = sphi 0, %s80
      %s97 = sphi 0, %s81
      %s103 = sphi 0, %s105
      %s106 = sphi 0, %s103
      %s107 = sphi 0, %s106
      %s123 = sphi 0, %s107
    $region4: #{tpu_custom_call.1} parent=1 // loop_header_branch
      %20 = sbr.rel (%p18) target = $region8
    $region5: #{tpu_custom_call.1} parent=1 // loop_body
      %s22 = ssub.s32 %s17, 1
      %s23 = ssub.s32 %s17, 2
      %s30 = sadd.s32 1, %s25
      %p31 = scmp.ge.s32.totalorder %s30, 1
      %s32 = scalar_select %p31, 0, %s30
      %s33 = sadd.s32 1, %s24
      %s34 = scalar_select %p31, %s33, %s24
      %p35 = scmp.ge.s32.totalorder %s34, 2
      %s36 = scalar_select %p35, 0, %s34
      %s37 = sadd.s32 %s24, %s25
      %p38 = scmp.lt.s32.totalorder %s37, 1
      %s39 = scalar_select %p38, %s37, 1
      %s40 = sadd.s32 %s36, %s32
      %p41 = scmp.lt.s32.totalorder %s40, 1
      %s42 = scalar_select %p41, %s40, 1
      %s43 = ssub.s32 %s39, %s42
      %p44 = scmp.eq.s32.totalorder %s43, 0
      %s46 = sadd.s32 %s45, 1
      %s47 = scalar_select %p44, %s45, %s46
      %p50 = pneg %p44
      %p51 = scmp.eq.s32.totalorder %s17, 1
      %p52 = por %p50, %p51
      %p53 = scmp.ne.s32.totalorder %s45, %s48
      %p54 = scmp.eq.s32.totalorder %s17, 0
      %p55 = por %p53, %p54
      %p56 = scmp.ne.s32.totalorder %s45, %s48
      %p57 = scmp.eq.s32.totalorder %s22, 1
      %p58 = por %p56, %p57
      %p59 = scmp.ne.s32.totalorder %s48, %s49
      %p60 = scmp.eq.s32.totalorder %s22, 0
      %p61 = por %p59, %p60
      %p62 = scmp.ne.s32.totalorder %s48, %s49
      %p63 = scmp.eq.s32.totalorder %s23, 1
      %p64 = por %p62, %p63
      %p66 = scmp.ne.s32.totalorder %s49, %s65
      %p67 = scmp.eq.s32.totalorder %s23, 0
      %p68 = por %p66, %p67
      %s69 = sadd.s32 %s24, %s25
      %p70 = scmp.lt.s32.totalorder %s69, 1
      %s71 = scalar_select %p70, %s69, 1
      %s72 = sadd.s32 %s36, %s32
      %p73 = scmp.lt.s32.totalorder %s72, 1
      %s74 = scalar_select %p73, %s72, 1
      %s75 = ssub.s32 %s71, %s74
      %p76 = scmp.eq.s32.totalorder %s75, 0
      %s78 = sadd.s32 %s77, 1
      %s79 = scalar_select %p76, %s77, %s78
      %p82 = pneg %p76
      %p83 = scmp.eq.s32.totalorder %s17, 1
      %p84 = por %p82, %p83
      %p85 = scmp.ne.s32.totalorder %s77, %s80
      %p86 = scmp.eq.s32.totalorder %s17, 0
      %p87 = por %p85, %p86
      %p88 = scmp.ne.s32.totalorder %s77, %s80
      %p89 = scmp.eq.s32.totalorder %s22, 1
      %p90 = por %p88, %p89
      %p91 = scmp.ne.s32.totalorder %s80, %s81
      %p92 = scmp.eq.s32.totalorder %s22, 0
      %p93 = por %p91, %p92
      %p94 = scmp.ne.s32.totalorder %s80, %s81
      %p95 = scmp.eq.s32.totalorder %s23, 1
      %p96 = por %p94, %p95
      %p98 = scmp.ne.s32.totalorder %s81, %s97
      %p99 = scmp.eq.s32.totalorder %s23, 0
      %p100 = por %p98, %p99
      %s101 = ssub.s32 %s24, %s36
      %p102 = scmp.eq.s32.totalorder %s101, 0
      %s104 = sadd.s32 %s103, 1
      %s105 = scalar_select %p102, %s103, %s104
      %p108 = pneg %p102
      %p109 = scmp.eq.s32.totalorder %s17, 1
      %p110 = por %p108, %p109
      %p111 = scmp.ne.s32.totalorder %s103, %s106
      %p112 = scmp.eq.s32.totalorder %s17, 0
      %p113 = por %p111, %p112
      %p114 = scmp.ne.s32.totalorder %s103, %s106
      %p115 = scmp.eq.s32.totalorder %s22, 1
      %p116 = por %p114, %p115
      %p117 = scmp.ne.s32.totalorder %s106, %s107
      %p118 = scmp.eq.s32.totalorder %s22, 0
      %p119 = por %p117, %p118
      %p120 = scmp.ne.s32.totalorder %s106, %s107
      %p121 = scmp.eq.s32.totalorder %s23, 1
      %p122 = por %p120, %p121
      %p124 = scmp.ne.s32.totalorder %s107, %s123
      %p125 = scmp.eq.s32.totalorder %s23, 0
      %p126 = por %p124, %p125
      %p127 = scmp.le.s32.totalorder 1, %s17
      %p128 = scmp.lt.s32.totalorder %s17, 3
      %p129 = pnand %p127, %p128
      %p130 = pneg %p129
      // Predicated region
      $region9: #{tpu_custom_call.1} parent=5 // pred_check
        _
      $region10: #{tpu_custom_call.1} parent=5 // pred_check_branch
        %132 = sbr.rel (%p129) target = $region12
      $region11: #{tpu_custom_call.1} parent=5 // pred_region
        %s133 = ssub.s32 %s17, 1
      $region12: #{tpu_custom_call.1} parent=5 // pred_fallthru
        _
      %p134 = scmp.lt.s32.totalorder %s17, 2
      // Predicated region
      $region13: #{tpu_custom_call.1} parent=5 // pred_check
        %p135 = pneg %p134
      $region14: #{tpu_custom_call.1} parent=5 // pred_check_branch
        %137 = sbr.rel (%p135) target = $region16
      $region15: #{tpu_custom_call.1} parent=5 // pred_region
        // Predicated region
        $region17: #{tpu_custom_call.1} parent=15 // pred_check
          %p138 = pneg %p55
        $region18: #{tpu_custom_call.1} parent=15 // pred_check_branch
          %140 = sbr.rel (%p138) target = $region20
        $region19: #{tpu_custom_call.1} parent=15 // pred_region
          %s141 = sand.u32 %s45, 1
          %s142 = scalar_lea.sflag [#allocation3], %s141
          %s143 = sand.u32 %s45, 1
          %s144 = smul.addr %s143, 128
          %s145 = scalar_lea.vmem [#allocation2], %s144
          %s146 = sadd.s32 %s24, %s25
          %p147 = scmp.lt.s32.totalorder %s146, 1
          %s148 = scalar_select %p147, %s146, 1
          %s149 = smul.u32 4, %s148
          %s150 = ssub.s32 7, %s149
          %p151 = scmp.lt.s32.totalorder %s150, 4
          %s152 = scalar_select %p151, %s150, 4
          %s153 = smul.u32 128, %s152
          %s154 = smul.u32 %s153, 4
          %s156 = ssub.s32 2048, %s154
          %157 = vsyncadd %s142, %s156
          %p158 = scmp.ne.s32.totalorder 0, %s154
          %s159 = smul.addr %s149, 4
          %s160 = smul.addr %s159, 128
          %s161 = scalar_lea.hbm %s0, %s160
          %s162 = smul.u32 32, %s152
          %s163 = sshll.u32 %s145, 4
          %s164 = int_to_ptr.vmem [resolvable:$true] %s163
          %s165 = sshll.u32 %s162, 4
          %169 = dma.hbm_to_vmem [thread:$0]  (%p158), %s161, %s165, %s164, %s142, 512, 512, 32
        $region20: #{tpu_custom_call.1} parent=15 // pred_fallthru
          _
        // Predicated region
        $region21: #{tpu_custom_call.1} parent=15 // pred_check
          %p170 = pneg %p87
        $region22: #{tpu_custom_call.1} parent=15 // pred_check_branch
          %172 = sbr.rel (%p170) target = $region24
        $region23: #{tpu_custom_call.1} parent=15 // pred_region
          %s173 = sand.u32 %s77, 1
          %s174 = scalar_lea.sflag [#allocation6], %s173
          %s175 = sand.u32 %s77, 1
          %s176 = smul.addr %s175, 128
          %s177 = scalar_lea.vmem [#allocation5], %s176
          %s178 = sadd.s32 %s24, %s25
          %p179 = scmp.lt.s32.totalorder %s178, 1
          %s180 = scalar_select %p179, %s178, 1
          %s181 = smul.u32 4, %s180
          %s182 = ssub.s32 7, %s181
          %p183 = scmp.lt.s32.totalorder %s182, 4
          %s184 = scalar_select %p183, %s182, 4
          %s185 = smul.u32 128, %s184
          %s186 = smul.u32 %s185, 4
          %s188 = ssub.s32 2048, %s186
          %189 = vsyncadd %s174, %s188
          %p190 = scmp.ne.s32.totalorder 0, %s186
          %s191 = smul.addr %s181, 4
          %s192 = smul.addr %s191, 128
          %s193 = scalar_lea.hbm %s1, %s192
          %s194 = smul.u32 32, %s184
          %s195 = sshll.u32 %s177, 4
          %s196 = int_to_ptr.vmem [resolvable:$true] %s195
          %s197 = sshll.u32 %s194, 4
          %201 = dma.hbm_to_vmem [thread:$0]  (%p190), %s193, %s197, %s196, %s174, 512, 512, 32
        $region24: #{tpu_custom_call.1} parent=15 // pred_fallthru
          _
      $region16: #{tpu_custom_call.1} parent=5 // pred_fallthru
        _
      %p202 = scmp.le.s32.totalorder 1, %s17
      %p203 = scmp.lt.s32.totalorder %s17, 3
      %p204 = pnand %p202, %p203
      %p205 = pneg %p204
      // Predicated region
      $region25: #{tpu_custom_call.1} parent=5 // pred_check
        _
      $region26: #{tpu_custom_call.1} parent=5 // pred_check_branch
        %207 = sbr.rel (%p204) target = $region28
      $region27: #{tpu_custom_call.1} parent=5 // pred_region
        %s208 = ssub.s32 %s17, 1
        %s209 = sand.u32 %s48, 1
        %s210 = scalar_lea.sflag [#allocation3], %s209
        %s211 = sand.u32 %s48, 1
        %s212 = smul.addr %s211, 128
        %s213 = scalar_lea.vmem [#allocation2], %s212
        // Predicated region
        $region29: #{tpu_custom_call.1} parent=27 // pred_check
          %p214 = pneg %p61
        $region30: #{tpu_custom_call.1} parent=27 // pred_check_branch
          %216 = sbr.rel (%p214) target = $region32
        $region31: #{tpu_custom_call.1} parent=27 // pred_region
          %217 = dma.done %s210, 2048
        $region32: #{tpu_custom_call.1} parent=27 // pred_fallthru
          _
        %s218 = sand.u32 %s80, 1
        %s219 = scalar_lea.sflag [#allocation6], %s218
        %s220 = sand.u32 %s80, 1
        %s221 = smul.addr %s220, 128
        %s222 = scalar_lea.vmem [#allocation5], %s221
        // Predicated region
        $region33: #{tpu_custom_call.1} parent=27 // pred_check
          %p223 = pneg %p93
        $region34: #{tpu_custom_call.1} parent=27 // pred_check_branch
          %225 = sbr.rel (%p223) target = $region36
        $region35: #{tpu_custom_call.1} parent=27 // pred_region
          %226 = dma.done %s219, 2048
        $region36: #{tpu_custom_call.1} parent=27 // pred_fallthru
          _
        %s227 = sand.u32 %s48, 1
        %s228 = scalar_lea.sflag [#allocation3], %s227
        %s229 = sand.u32 %s48, 1
        %s230 = smul.addr %s229, 128
        %s231 = scalar_lea.vmem [#allocation2], %s230
        %p232 = pneg %p61
        %p233 = pneg %p58
        %s234 = sand.u32 %s80, 1
        %s235 = scalar_lea.sflag [#allocation6], %s234
        %s236 = sand.u32 %s80, 1
        %s237 = smul.addr %s236, 128
        %s238 = scalar_lea.vmem [#allocation5], %s237
        %p239 = pneg %p93
        %p240 = pneg %p90
        %p241 = pneg %p119
        %p242 = pneg %p116
        %s243 = sand.u32 %s106, 1
        %s244 = scalar_lea.sflag [#allocation4], %s243
        %s245 = sand.u32 %s106, 1
        %s246 = smul.addr %s245, 32
        %s247 = scalar_lea.vmem [#allocation7], %s246
        %s248 = sadd.s32 %s26, %s27
        %p249 = scmp.lt.s32.totalorder %s248, 1
        %s250 = scalar_select %p249, %s248, 1
        %s251 = smul.u32 4, %s250
        %s252 = ssub.s32 7, %s251
        %p253 = scmp.lt.s32.totalorder %s252, 4
        %s254 = scalar_select %p253, %s252, 4
        %s255 = smul.u32 128, %s254
        %s256 = smul.u32 %s255, 4
        %s257 = sadd.s32 %s26, %s27
        %p258 = scmp.lt.s32.totalorder %s257, 1
        %s259 = scalar_select %p258, %s257, 1
        %s260 = smul.u32 4, %s259
        %s261 = ssub.s32 7, %s260
        %p262 = scmp.lt.s32.totalorder %s261, 4
        %s263 = scalar_select %p262, %s261, 4
        %s264 = smul.u32 128, %s263
        %s265 = smul.u32 %s264, 4
        %p266 = scmp.eq.s32.totalorder %s27, 0
        // Predicated region
        $region37: #{tpu_custom_call.1} parent=27 // pred_check
          %p267 = pneg %p266
        $region38: #{tpu_custom_call.1} parent=27 // pred_check_branch
          %269 = sbr.rel (%p267) target = $region40
        $region39: #{tpu_custom_call.1} parent=27 // pred_region
          %270 = vst [vmem:[%s247] sm:$0xff] 0.0
          %271 = vst [vmem:[%s247 + $0x8] sm:$0xff] 0.0
          %272 = vst [vmem:[%s247 + $0x10] sm:$0xff] 0.0
          %273 = vst [vmem:[%s247 + $0x18] sm:$0xff] 0.0
        $region40: #{tpu_custom_call.1} parent=27 // pred_fallthru
          _
        %v274 = vld [vmem:[%s213] sm:$0xff]
        %v275 = vld [vmem:[%s213 + $0x8] sm:$0xff]
        %v276 = vld [vmem:[%s213 + $0x10] sm:$0xff]
        %v277 = vld [vmem:[%s213 + $0x18] sm:$0xff]
        %v278 = vld [vmem:[%s213 + $0x20] sm:$0xff]
        %v279 = vld [vmem:[%s213 + $0x28] sm:$0xff]
        %v280 = vld [vmem:[%s213 + $0x30] sm:$0xff]
        %v281 = vld [vmem:[%s213 + $0x38] sm:$0xff]
        %v282 = vld [vmem:[%s213 + $0x40] sm:$0xff]
        %v283 = vld [vmem:[%s213 + $0x48] sm:$0xff]
        %v284 = vld [vmem:[%s213 + $0x50] sm:$0xff]
        %v285 = vld [vmem:[%s213 + $0x58] sm:$0xff]
        %v286 = vld [vmem:[%s213 + $0x60] sm:$0xff]
        %v287 = vld [vmem:[%s213 + $0x68] sm:$0xff]
        %v288 = vld [vmem:[%s213 + $0x70] sm:$0xff]
        %v289 = vld [vmem:[%s213 + $0x78] sm:$0xff]
        %v290 = vld [vmem:[%s222] sm:$0xff]
        %v291 = vld [vmem:[%s222 + $0x8] sm:$0xff]
        %v292 = vld [vmem:[%s222 + $0x10] sm:$0xff]
        %v293 = vld [vmem:[%s222 + $0x18] sm:$0xff]
        %v294 = vld [vmem:[%s222 + $0x20] sm:$0xff]
        %v295 = vld [vmem:[%s222 + $0x28] sm:$0xff]
        %v296 = vld [vmem:[%s222 + $0x30] sm:$0xff]
        %v297 = vld [vmem:[%s222 + $0x38] sm:$0xff]
        %v298 = vld [vmem:[%s222 + $0x40] sm:$0xff]
        %v299 = vld [vmem:[%s222 + $0x48] sm:$0xff]
        %v300 = vld [vmem:[%s222 + $0x50] sm:$0xff]
        %v301 = vld [vmem:[%s222 + $0x58] sm:$0xff]
        %v302 = vld [vmem:[%s222 + $0x60] sm:$0xff]
        %v303 = vld [vmem:[%s222 + $0x68] sm:$0xff]
        %v304 = vld [vmem:[%s222 + $0x70] sm:$0xff]
        %v305 = vld [vmem:[%s222 + $0x78] sm:$0xff]
        %v306 = vsub.f32 %v274, %v290
        %v307 = vsub.f32 %v275, %v291
        %v308 = vsub.f32 %v276, %v292
        %v309 = vsub.f32 %v277, %v293
        %v310 = vsub.f32 %v278, %v294
        %v311 = vsub.f32 %v279, %v295
        %v312 = vsub.f32 %v280, %v296
        %v313 = vsub.f32 %v281, %v297
        %v314 = vsub.f32 %v282, %v298
        %v315 = vsub.f32 %v283, %v299
        %v316 = vsub.f32 %v284, %v300
        %v317 = vsub.f32 %v285, %v301
        %v318 = vsub.f32 %v286, %v302
        %v319 = vsub.f32 %v287, %v303
        %v320 = vsub.f32 %v288, %v304
        %v321 = vsub.f32 %v289, %v305
        %v322 = vmul.f32 %v306, %v306
        %v323 = vmul.f32 %v307, %v307
        %v324 = vmul.f32 %v308, %v308
        %v325 = vmul.f32 %v309, %v309
        %v326 = vmul.f32 %v310, %v310
        %v327 = vmul.f32 %v311, %v311
        %v328 = vmul.f32 %v312, %v312
        %v329 = vmul.f32 %v313, %v313
        %v330 = vmul.f32 %v314, %v314
        %v331 = vmul.f32 %v315, %v315
        %v332 = vmul.f32 %v316, %v316
        %v333 = vmul.f32 %v317, %v317
        %v334 = vmul.f32 %v318, %v318
        %v335 = vmul.f32 %v319, %v319
        %v336 = vmul.f32 %v320, %v320
        %v337 = vmul.f32 %v321, %v321
        %s338 = sadd.s32 %s26, %s27
        %s339 = smul.u32 %s338, 32
        %s340 = sadd.s32 %s339, 32
        %p341 = scmp.gt.s32.totalorder %s340, 50
        // Predicated region
        $region41: #{tpu_custom_call.1} parent=27 // pred_check
          %p342 = pneg %p341
        $region42: #{tpu_custom_call.1} parent=27 // pred_check_branch
          %344 = sbr.rel (%p342) target = $region44
        $region43: #{tpu_custom_call.1} parent=27 // pred_region
          %v345 = vlaneseq
          %v346 = vshrl.u32 %v345, 7
          %v347 = vadd.s32 %v346, 8
          %v348 = vadd.s32 %v346, 16
          %v349 = vadd.s32 %v346, 24
          %v350 = vstv %s339
          %v351 = vadd.s32 %v350, %v346
          %v352 = vadd.s32 %v350, %v347
          %v353 = vadd.s32 %v350, %v348
          %v354 = vadd.s32 %v350, %v349
          %vm355 = vcmp.lt.s32.totalorder %v351, 50
          %vm356 = vcmp.lt.s32.totalorder %v352, 50
          %vm357 = vcmp.lt.s32.totalorder %v353, 50
          %vm358 = vcmp.lt.s32.totalorder %v354, 50
          %v359 = vsel %vm355, %v322, 0.0
          %v360 = vsel %vm355, %v323, 0.0
          %v361 = vsel %vm355, %v324, 0.0
          %v362 = vsel %vm355, %v325, 0.0
          %v363 = vsel %vm356, %v326, 0.0
          %v364 = vsel %vm356, %v327, 0.0
          %v365 = vsel %vm356, %v328, 0.0
          %v366 = vsel %vm356, %v329, 0.0
          %v367 = vsel %vm357, %v330, 0.0
          %v368 = vsel %vm357, %v331, 0.0
          %v369 = vsel %vm357, %v332, 0.0
          %v370 = vsel %vm357, %v333, 0.0
          %v371 = vsel %vm358, %v334, 0.0
          %v372 = vsel %vm358, %v335, 0.0
          %v373 = vsel %vm358, %v336, 0.0
          %v374 = vsel %vm358, %v337, 0.0
          %v375 = vld [vmem:[%s247] sm:$0xff]
          %v376 = vld [vmem:[%s247 + $0x8] sm:$0xff]
          %v377 = vld [vmem:[%s247 + $0x10] sm:$0xff]
          %v378 = vld [vmem:[%s247 + $0x18] sm:$0xff]
          %v379 = vadd.f32 %v359, %v363
          %v380 = vadd.f32 %v360, %v364
          %v381 = vadd.f32 %v361, %v365
          %v382 = vadd.f32 %v362, %v366
          %v383 = vadd.f32 %v367, %v371
          %v384 = vadd.f32 %v368, %v372
          %v385 = vadd.f32 %v369, %v373
          %v386 = vadd.f32 %v370, %v374
          %v387 = vadd.f32 %v379, %v383
          %v388 = vadd.f32 %v380, %v384
          %v389 = vadd.f32 %v381, %v385
          %v390 = vadd.f32 %v382, %v386
          %v391 = vadd.f32 %v375, %v387
          %v392 = vadd.f32 %v376, %v388
          %v393 = vadd.f32 %v377, %v389
          %v394 = vadd.f32 %v378, %v390
          %395 = vst [vmem:[%s247] sm:$0xff] %v391
          %396 = vst [vmem:[%s247 + $0x8] sm:$0xff] %v392
          %397 = vst [vmem:[%s247 + $0x10] sm:$0xff] %v393
          %398 = vst [vmem:[%s247 + $0x18] sm:$0xff] %v394
        $region44: #{tpu_custom_call.1} parent=27 // pred_fallthru
          _
        %p399 = scmp.le.s32.totalorder %s340, 50
        // Predicated region
        $region45: #{tpu_custom_call.1} parent=27 // pred_check
          %p400 = pneg %p399
        $region46: #{tpu_custom_call.1} parent=27 // pred_check_branch
          %402 = sbr.rel (%p400) target = $region48
        $region47: #{tpu_custom_call.1} parent=27 // pred_region
          %v403 = vld [vmem:[%s247] sm:$0xff]
          %v404 = vld [vmem:[%s247 + $0x8] sm:$0xff]
          %v405 = vld [vmem:[%s247 + $0x10] sm:$0xff]
          %v406 = vld [vmem:[%s247 + $0x18] sm:$0xff]
          %v407 = vadd.f32 %v322, %v326
          %v408 = vadd.f32 %v323, %v327
          %v409 = vadd.f32 %v324, %v328
          %v410 = vadd.f32 %v325, %v329
          %v411 = vadd.f32 %v330, %v334
          %v412 = vadd.f32 %v331, %v335
          %v413 = vadd.f32 %v332, %v336
          %v414 = vadd.f32 %v333, %v337
          %v415 = vadd.f32 %v407, %v411
          %v416 = vadd.f32 %v408, %v412
          %v417 = vadd.f32 %v409, %v413
          %v418 = vadd.f32 %v410, %v414
          %v419 = vadd.f32 %v403, %v415
          %v420 = vadd.f32 %v404, %v416
          %v421 = vadd.f32 %v405, %v417
          %v422 = vadd.f32 %v406, %v418
          %423 = vst [vmem:[%s247] sm:$0xff] %v419
          %424 = vst [vmem:[%s247 + $0x8] sm:$0xff] %v420
          %425 = vst [vmem:[%s247 + $0x10] sm:$0xff] %v421
          %426 = vst [vmem:[%s247 + $0x18] sm:$0xff] %v422
        $region48: #{tpu_custom_call.1} parent=27 // pred_fallthru
          _
        %s427 = sand.u32 %s106, 1
        %s428 = scalar_lea.sflag [#allocation4], %s427
        %s429 = sand.u32 %s106, 1
        %s430 = smul.addr %s429, 32
        %s431 = scalar_lea.vmem [#allocation7], %s430
        // Predicated region
        $region49: #{tpu_custom_call.1} parent=27 // pred_check
          %p432 = pneg %p116
        $region50: #{tpu_custom_call.1} parent=27 // pred_check_branch
          %434 = sbr.rel (%p432) target = $region52
        $region51: #{tpu_custom_call.1} parent=27 // pred_region
          %s436 = ssub.s32 512, 512
          %437 = vsyncadd %s428, %s436
          %s438 = smul.addr %s26, 4
          %s439 = smul.addr %s438, 128
          %s440 = scalar_lea.hbm %s2, %s439
          %s442 = sshll.u32 %s431, 4
          %s443 = int_to_ptr.vmem [resolvable:$true] %s442
          %445 = dma.vmem_to_hbm [thread:$0]  %s443, 512, %s440, %s428
        $region52: #{tpu_custom_call.1} parent=27 // pred_fallthru
          _
      $region28: #{tpu_custom_call.1} parent=5 // pred_fallthru
        _
      %p446 = scmp.le.s32.totalorder 2, %s17
      // Predicated region
      $region53: #{tpu_custom_call.1} parent=5 // pred_check
        %p447 = pneg %p446
      $region54: #{tpu_custom_call.1} parent=5 // pred_check_branch
        %449 = sbr.rel (%p447) target = $region56
      $region55: #{tpu_custom_call.1} parent=5 // pred_region
        %s450 = ssub.s32 %s17, 2
        // Predicated region
        $region57: #{tpu_custom_call.1} parent=55 // pred_check
          %p451 = pneg %p122
        $region58: #{tpu_custom_call.1} parent=55 // pred_check_branch
          %453 = sbr.rel (%p451) target = $region60
        $region59: #{tpu_custom_call.1} parent=55 // pred_region
          %s454 = sand.u32 %s107, 1
          %s455 = scalar_lea.sflag [#allocation4], %s454
          %s456 = sand.u32 %s107, 1
          %s457 = smul.addr %s456, 32
          %s458 = scalar_lea.vmem [#allocation7], %s457
          %459 = dma.done %s455, 512
        $region60: #{tpu_custom_call.1} parent=55 // pred_fallthru
          _
      $region56: #{tpu_custom_call.1} parent=5 // pred_fallthru
        _
    $region6: #{tpu_custom_call.1} parent=1 // loop_footer
      %s21 = sadd.s32 1, %s17
    $region7: #{tpu_custom_call.1} parent=1 // loop_footer_branch
      %16 = sbr.rel target = $region3
    $region8: #{tpu_custom_call.1} parent=1 // loop_exit
      _
    %460 = vsyncpa [#allocation3], 1
    %s461 = scalar_lea.sflag [#allocation3], 1
    %462 = vsyncpa %s461, 1
    %463 = vsyncpa [#allocation6], 1
    %s464 = scalar_lea.sflag [#allocation6], 1
    %465 = vsyncpa %s464, 1
    %466 = vsyncpa [#allocation4], 1
    %s467 = scalar_lea.sflag [#allocation4], 1
    %468 = vsyncpa %s467, 1

</llo_original>
